<compile_context>
chip_gen: v7x
topology: tpu7x:2x2x1
jax: 0.10.0
libtpu: 0.0.40
codegen_flags: <defaults>
</compile_context>

<pallas_src>
import functools

import jax
import jax.numpy as jnp
from jax.experimental import pallas as pl
from jax.experimental.pallas import tpu as pltpu


# ---------------------------------------------------------------------------
# Synthetic config (matches the PyTorch module's __init__ defaults)
# ---------------------------------------------------------------------------
LATENT_DIM = 16
HIDDEN_SIZE = 50          # nn.Linear(latent_dim, 50)
MAX_K = 10000.0
DROPOUT_P = 0.2           # eval-mode forward: dropout is identity
FEAT_DISTS = (
    ("gaussian", 2),
    ("bernoulli", 1),
    ("categorical", 3),
    ("weibull", 2),
)


def get_dim_from_type(feat_dists):
    return sum(n for _, n in feat_dists)


OUT_DIM = get_dim_from_type(FEAT_DISTS)  # = 8


# ---------------------------------------------------------------------------
# Helpers
# ---------------------------------------------------------------------------
def _softplus(x):
    # numerically-stable softplus (same formula used in kernel and reference)
    return jnp.logaddexp(x, 0.0)


# ---------------------------------------------------------------------------
# Kernel (batch-on-lanes layout: rows = feature-parameter slots, lanes = batch)
# ---------------------------------------------------------------------------
def decoder_kernel(z_ref, w1t_ref, b1_ref, w2t_ref, b2_ref, out_ref,
                   *, feat_dists, max_k):
    # dec1 + ReLU:  [H, L] @ [L, Bt] -> [H, Bt]   (MXU, fp32 accumulation)
    h = jnp.dot(w1t_ref[...], z_ref[...], preferred_element_type=jnp.float32)
    h = jnp.maximum(h + b1_ref[...], 0.0)          # b1 is (H, 1), broadcasts over lanes

    # TODO(synk): nn.Dropout(p=0.2) is identity in eval mode; training-mode
    # stochastic masking (pltpu.prng_seed + prng_random_bits) not emitted here.

    # dec2:  [D, H] @ [H, Bt] -> [D, Bt]
    logits = jnp.dot(w2t_ref[...], h, preferred_element_type=jnp.float32)
    logits = logits + b2_ref[...]                  # b2 is (D, 1)

    eps = 1e-3

    # Full-tile transcendentals: one EUP pass each over the whole (D, Bt) tile.
    sp = _softplus(logits) + eps                   # softplus (+eps) everywhere
    sg = jax.nn.sigmoid(logits)                    # sigmoid everywhere

    # Static per-row classification of the output slots (trace-time).
    sp_rows = []       # softplus rows: gaussian std, weibull lambda
    spk_rows = []      # softplus + clamp rows: weibull k
    sg_rows = []       # sigmoid rows: bernoulli
    cat_groups = []    # (start_row, n) softmax groups: categorical
    col = 0
    for dist, n in feat_dists:
        if dist == "gaussian":
            # row col     -> identity (mean)   [default]
            sp_rows.append(col + 1)              # std
        elif dist == "bernoulli":
            sg_rows.extend(range(col, col + n))
        elif dist == "categorical":
            cat_groups.append((col, n))
        elif dist == "weibull":
            sp_rows.append(col)                  # lambda
            spk_rows.append(col + 1)             # k (clamped)
        else:
            raise ValueError(f"unknown feature distribution: {dist}")
        col += n

    row_idx = jax.lax.broadcasted_iota(jnp.int32, logits.shape, 0)

    def rows_mask(rows):
        m = row_idx == rows[0]
        for r in rows[1:]:
            m = m | (row_idx == r)
        return m

    # Combine with static sublane-row masks; gaussian-mean rows stay identity.
    result = logits
    if sp_rows:
        result = jnp.where(rows_mask(sp_rows), sp, result)
    if spk_rows:
        result = jnp.where(rows_mask(spk_rows), jnp.minimum(sp, max_k), result)
    if sg_rows:
        result = jnp.where(rows_mask(sg_rows), sg, result)
    for col0, n in cat_groups:
        grp = (row_idx >= col0) & (row_idx < col0 + n)
        masked = jnp.where(grp, logits, -jnp.inf)
        m = jnp.max(masked, axis=0, keepdims=True)          # [1, Bt]
        e = jnp.where(grp, jnp.exp(logits - m), 0.0)         # one exp pass
        s = jnp.sum(e, axis=0, keepdims=True)                # [1, Bt]
        result = jnp.where(grp, e / s, result)

    # Single lane-dense full-block store.
    out_ref[...] = result


# ---------------------------------------------------------------------------
# Wrapper
# ---------------------------------------------------------------------------
def decoder_forward(z, w1, b1, w2, b2,
                    feat_dists=FEAT_DISTS, max_k=MAX_K, block_b=512):
    """z: [B, L];  w1: [L, H];  b1: [H];  w2: [H, D];  b2: [D]  ->  [B, D]."""
    B, L = z.shape
    H = w1.shape[1]
    D = w2.shape[1]
    assert w1.shape == (L, H) and w2.shape == (H, D)

    # Flip to batch-on-lanes layout (layout plumbing outside the kernel).
    z_t = jnp.transpose(z)                 # [L, B]
    w1_t = jnp.transpose(w1)               # [H, L]
    w2_t = jnp.transpose(w2)               # [D, H]
    b1_c = b1.reshape(H, 1)
    b2_c = b2.reshape(D, 1)

    # Tile the batch (lane) axis only when it divides cleanly into 128-aligned
    # blocks; otherwise use a single full-extent block (always legal).
    if B >= 2 * block_b and B % block_b == 0:
        Bt = block_b
    else:
        Bt = B
    grid = (B // Bt,)

    kernel = functools.partial(decoder_kernel,
                               feat_dists=feat_dists, max_k=max_k)

    out_t = pl.pallas_call(
        kernel,
        out_shape=jax.ShapeDtypeStruct((D, B), jnp.float32),
        grid_spec=pltpu.PrefetchScalarGridSpec(
            num_scalar_prefetch=0,
            grid=grid,
            in_specs=[
                pl.BlockSpec((L, Bt), lambda i: (0, i)),   # z^T streams over batch
                pl.BlockSpec((H, L), lambda i: (0, 0)),    # weights resident in VMEM
                pl.BlockSpec((H, 1), lambda i: (0, 0)),
                pl.BlockSpec((D, H), lambda i: (0, 0)),
                pl.BlockSpec((D, 1), lambda i: (0, 0)),
            ],
            out_specs=pl.BlockSpec((D, Bt), lambda i: (0, i)),
        ),
        compiler_params=pltpu.CompilerParams(
            dimension_semantics=("parallel",)),   # 2-TC sharding on v7x
    )(z_t, w1_t, b1_c, w2_t, b2_c)

    return jnp.transpose(out_t)            # back to [B, D]


# ---------------------------------------------------------------------------
# Pure-JAX reference (for a sanity check)
# ---------------------------------------------------------------------------
def decoder_ref(z, w1, b1, w2, b2, feat_dists=FEAT_DISTS, max_k=MAX_K):
    h = jnp.maximum(z @ w1 + b1, 0.0)
    logits = h @ w2 + b2
    outs = []
    eps = 1e-3
    col = 0
    for dist, n in feat_dists:
        sl = logits[:, col:col + n]
        if dist == "gaussian":
            outs.append(sl[:, 0:1])
            outs.append(_softplus(sl[:, 1:2]) + eps)
        elif dist == "bernoulli":
            outs.append(jax.nn.sigmoid(sl))
        elif dist == "categorical":
            outs.append(jax.nn.softmax(sl, axis=-1))
        elif dist == "weibull":
            outs.append(_softplus(sl[:, 0:1]) + eps)
            outs.append(jnp.minimum(_softplus(sl[:, 1:2]) + eps, max_k))
        col += n
    return jnp.concatenate(outs, axis=-1)


# ---------------------------------------------------------------------------
# Main
# ---------------------------------------------------------------------------
if __name__ == "__main__":
    key = jax.random.PRNGKey(0)
    k_z, k_w1, k_b1, k_w2, k_b2, k_zbig = jax.random.split(key, 6)

    # Deterministic parameters (uniform, scaled like PyTorch Linear default)
    lim1 = 1.0 / (LATENT_DIM ** 0.5)
    lim2 = 1.0 / (HIDDEN_SIZE ** 0.5)
    w1 = jax.random.uniform(k_w1, (LATENT_DIM, HIDDEN_SIZE), jnp.float32,
                            -lim1, lim1)
    b1 = jax.random.uniform(k_b1, (HIDDEN_SIZE,), jnp.float32, -lim1, lim1)
    w2 = jax.random.uniform(k_w2, (HIDDEN_SIZE, OUT_DIM), jnp.float32,
                            -lim2, lim2)
    b2 = jax.random.uniform(k_b2, (OUT_DIM,), jnp.float32, -lim2, lim2)

    # Small-batch case (single grid step, full-extent blocks).
    B = 8
    z = jax.random.normal(k_z, (B, LATENT_DIM), dtype=jnp.float32)
    out = jax.block_until_ready(decoder_forward(z, w1, b1, w2, b2))
    ref = decoder_ref(z, w1, b1, w2, b2)
    assert out.shape == (B, OUT_DIM)
    err = float(jnp.max(jnp.abs(out - ref)))
    assert err < 1e-4, f"small-batch max abs err = {err}"

    # Large-batch case exercises the batch grid (Bt=512) + parallel semantics.
    Bbig = 1024
    z_big = jax.random.normal(k_zbig, (Bbig, LATENT_DIM), dtype=jnp.float32)
    out_big = jax.block_until_ready(decoder_forward(z_big, w1, b1, w2, b2))
    ref_big = decoder_ref(z_big, w1, b1, w2, b2)
    assert out_big.shape == (Bbig, OUT_DIM)
    err_big = float(jnp.max(jnp.abs(out_big - ref_big)))
    assert err_big < 1e-4, f"large-batch max abs err = {err_big}"

    print("KERNEL_OK")
</pallas_src>

<mosaic_0001>
module attributes {stable_mosaic.version = 11 : i64} {
  func.func @decoder_kernel(%arg0: i32, %arg1: memref<16x8xf32, #tpu.memory_space<vmem>>, %arg2: memref<50x16xf32, #tpu.memory_space<vmem>>, %arg3: memref<50x1xf32, #tpu.memory_space<vmem>>, %arg4: memref<8x50xf32, #tpu.memory_space<vmem>>, %arg5: memref<8x1xf32, #tpu.memory_space<vmem>>, %arg6: memref<8x8xf32, #tpu.memory_space<vmem>>) attributes {dimension_semantics = [#tpu.dimension_semantics<parallel>], iteration_bounds = array<i64: 1>, scalar_prefetch = 0 : i64, scratch_operands = 0 : i64, tpu.core_type = #tpu.core_type<tc>, window_params = [{transform_indices = @transform_0, window_bounds = array<i64: 16, 8>}, {pipeline_mode = #tpu.pipeline_mode<synchronous>, transform_indices = @transform_1, window_bounds = array<i64: 50, 16>}, {pipeline_mode = #tpu.pipeline_mode<synchronous>, transform_indices = @transform_2, window_bounds = array<i64: 50, 1>}, {pipeline_mode = #tpu.pipeline_mode<synchronous>, transform_indices = @transform_3, window_bounds = array<i64: 8, 50>}, {pipeline_mode = #tpu.pipeline_mode<synchronous>, transform_indices = @transform_4, window_bounds = array<i64: 8, 1>}, {transform_indices = @transform_5, window_bounds = array<i64: 8, 8>}]} {
    %c0 = arith.constant 0 : index
    %c0_0 = arith.constant 0 : index
    %0 = vector.load %arg2[%c0, %c0_0] : memref<50x16xf32, #tpu.memory_space<vmem>>, vector<50x16xf32>
    %c0_1 = arith.constant 0 : index
    %c0_2 = arith.constant 0 : index
    %1 = vector.load %arg1[%c0_1, %c0_2] : memref<16x8xf32, #tpu.memory_space<vmem>>, vector<16x8xf32>
    %cst = arith.constant dense<0.000000e+00> : vector<50x8xf32>
    %2 = tpu.matmul %0, %1, %cst {dimension_numbers = #tpu.dot_dimension_numbers<[1], [0], [0], [1], [0, 0, 1, 1], [], []>} : vector<50x16xf32>, vector<16x8xf32>, vector<50x8xf32> -> vector<50x8xf32>
    %c0_3 = arith.constant 0 : index
    %c0_4 = arith.constant 0 : index
    %3 = vector.load %arg3[%c0_3, %c0_4] : memref<50x1xf32, #tpu.memory_space<vmem>>, vector<50x1xf32>
    %4 = vector.broadcast %3 : vector<50x1xf32> to vector<50x8xf32>
    %5 = arith.addf %2, %4 : vector<50x8xf32>
    %cst_5 = arith.constant 0.000000e+00 : f32
    %6 = vector.broadcast %cst_5 : f32 to vector<50x8xf32>
    %7 = arith.maximumf %5, %6 : vector<50x8xf32>
    %c0_6 = arith.constant 0 : index
    %c0_7 = arith.constant 0 : index
    %8 = vector.load %arg4[%c0_6, %c0_7] : memref<8x50xf32, #tpu.memory_space<vmem>>, vector<8x50xf32>
    %cst_8 = arith.constant dense<0.000000e+00> : vector<8x8xf32>
    %9 = tpu.matmul %8, %7, %cst_8 {dimension_numbers = #tpu.dot_dimension_numbers<[1], [0], [0], [1], [0, 0, 1, 1], [], []>} : vector<8x50xf32>, vector<50x8xf32>, vector<8x8xf32> -> vector<8x8xf32>
    %c0_9 = arith.constant 0 : index
    %c0_10 = arith.constant 0 : index
    %10 = vector.load %arg5[%c0_9, %c0_10] : memref<8x1xf32, #tpu.memory_space<vmem>>, vector<8x1xf32>
    %11 = vector.broadcast %10 : vector<8x1xf32> to vector<8x8xf32>
    %12 = arith.addf %9, %11 : vector<8x8xf32>
    %cst_11 = arith.constant 0.000000e+00 : f32
    %13 = vector.broadcast %cst_11 : f32 to vector<8x8xf32>
    %14 = arith.maximumf %12, %13 : vector<8x8xf32>
    %15 = vector.broadcast %cst_11 : f32 to vector<8x8xf32>
    %16 = arith.subf %12, %15 : vector<8x8xf32>
    %17 = arith.cmpf one, %16, %16 : vector<8x8xf32>
    %18 = vector.broadcast %cst_11 : f32 to vector<8x8xf32>
    %19 = arith.addf %12, %18 : vector<8x8xf32>
    %20 = math.absf %16 : vector<8x8xf32>
    %cst_12 = arith.constant 0.000000e+00 : f32
    %21 = vector.broadcast %cst_12 : f32 to vector<8x8xf32>
    %22 = arith.subf %21, %20 : vector<8x8xf32>
    %23 = math.exp %22 : vector<8x8xf32>
    %24 = math.log1p %23 : vector<8x8xf32>
    %25 = arith.addf %14, %24 : vector<8x8xf32>
    %26 = arith.select %17, %19, %25 : vector<8x8xi1>, vector<8x8xf32>
    %cst_13 = arith.constant 1.000000e-03 : f32
    %27 = vector.broadcast %cst_13 : f32 to vector<8x8xf32>
    %28 = arith.addf %26, %27 : vector<8x8xf32>
    %29 = arith.negf %12 : vector<8x8xf32>
    %30 = math.exp %29 : vector<8x8xf32>
    %cst_14 = arith.constant 1.000000e+00 : f32
    %31 = vector.broadcast %cst_14 : f32 to vector<8x8xf32>
    %32 = arith.addf %31, %30 : vector<8x8xf32>
    %33 = arith.divf %31, %32 : vector<8x8xf32>
    %34 = tpu.iota {dimensions = array<i32: 0>} : vector<8x8xi32>
    %c1_i32 = arith.constant 1 : i32
    %35 = vector.broadcast %c1_i32 : i32 to vector<8x8xi32>
    %36 = arith.cmpi eq, %34, %35 : vector<8x8xi32>
    %c6_i32 = arith.constant 6 : i32
    %37 = vector.broadcast %c6_i32 : i32 to vector<8x8xi32>
    %38 = arith.cmpi eq, %34, %37 : vector<8x8xi32>
    %39 = arith.ori %36, %38 : vector<8x8xi1>
    %40 = arith.select %39, %28, %12 : vector<8x8xi1>, vector<8x8xf32>
    %c7_i32 = arith.constant 7 : i32
    %41 = vector.broadcast %c7_i32 : i32 to vector<8x8xi32>
    %42 = arith.cmpi eq, %34, %41 : vector<8x8xi32>
    %cst_15 = arith.constant 1.000000e+04 : f32
    %43 = vector.broadcast %cst_15 : f32 to vector<8x8xf32>
    %44 = arith.minimumf %28, %43 : vector<8x8xf32>
    %45 = arith.select %42, %44, %40 : vector<8x8xi1>, vector<8x8xf32>
    %c2_i32 = arith.constant 2 : i32
    %46 = vector.broadcast %c2_i32 : i32 to vector<8x8xi32>
    %47 = arith.cmpi eq, %34, %46 : vector<8x8xi32>
    %48 = arith.select %47, %33, %45 : vector<8x8xi1>, vector<8x8xf32>
    %c3_i32 = arith.constant 3 : i32
    %49 = vector.broadcast %c3_i32 : i32 to vector<8x8xi32>
    %50 = arith.cmpi sge, %34, %49 : vector<8x8xi32>
    %c6_i32_16 = arith.constant 6 : i32
    %51 = vector.broadcast %c6_i32_16 : i32 to vector<8x8xi32>
    %52 = arith.cmpi slt, %34, %51 : vector<8x8xi32>
    %53 = arith.andi %50, %52 : vector<8x8xi1>
    %cst_17 = arith.constant 0xFF800000 : f32
    %54 = vector.broadcast %cst_17 : f32 to vector<8x8xf32>
    %55 = arith.select %53, %12, %54 : vector<8x8xi1>, vector<8x8xf32>
    %cst_18 = arith.constant dense<0xFF800000> : vector<8xf32>
    %56 = vector.multi_reduction <maximumf>, %55, %cst_18 [0] : vector<8x8xf32> to vector<8xf32>
    %57 = vector.shape_cast %56 : vector<8xf32> to vector<1x8xf32>
    %58 = vector.broadcast %57 : vector<1x8xf32> to vector<8x8xf32>
    %59 = arith.subf %12, %58 : vector<8x8xf32>
    %60 = math.exp %59 : vector<8x8xf32>
    %cst_19 = arith.constant 0.000000e+00 : f32
    %61 = vector.broadcast %cst_19 : f32 to vector<8x8xf32>
    %62 = arith.select %53, %60, %61 : vector<8x8xi1>, vector<8x8xf32>
    %cst_20 = arith.constant dense<0.000000e+00> : vector<8xf32>
    %63 = vector.multi_reduction <add>, %62, %cst_20 [0] : vector<8x8xf32> to vector<8xf32>
    %64 = vector.shape_cast %63 : vector<8xf32> to vector<1x8xf32>
    %65 = vector.broadcast %64 : vector<1x8xf32> to vector<8x8xf32>
    %66 = arith.divf %62, %65 : vector<8x8xf32>
    %67 = arith.select %53, %66, %48 : vector<8x8xi1>, vector<8x8xf32>
    %c0_21 = arith.constant 0 : index
    %c0_22 = arith.constant 0 : index
    %68 = vector.load %arg6[%c0_21, %c0_22] : memref<8x8xf32, #tpu.memory_space<vmem>>, vector<8x8xf32>
    tpu.vector_store %arg6[%c0_21, %c0_22], %67 {strides = array<i32>} : memref<8x8xf32, #tpu.memory_space<vmem>>, vector<8x8xf32>,
    return
  }
  func.func @transform_0(%arg0: i32) -> (i32, i32) {
    %c0_i32 = arith.constant 0 : i32
    %c0_i32_0 = arith.constant 0 : i32
    return %c0_i32, %arg0 : i32, i32
  }
  func.func @transform_1(%arg0: i32) -> (i32, i32) {
    %c0_i32 = arith.constant 0 : i32
    %c0_i32_0 = arith.constant 0 : i32
    %c0_i32_1 = arith.constant 0 : i32
    return %c0_i32, %c0_i32_0 : i32, i32
  }
  func.func @transform_2(%arg0: i32) -> (i32, i32) {
    %c0_i32 = arith.constant 0 : i32
    %c0_i32_0 = arith.constant 0 : i32
    %c0_i32_1 = arith.constant 0 : i32
    return %c0_i32, %c0_i32_0 : i32, i32
  }
  func.func @transform_3(%arg0: i32) -> (i32, i32) {
    %c0_i32 = arith.constant 0 : i32
    %c0_i32_0 = arith.constant 0 : i32
    %c0_i32_1 = arith.constant 0 : i32
    return %c0_i32, %c0_i32_0 : i32, i32
  }
  func.func @transform_4(%arg0: i32) -> (i32, i32) {
    %c0_i32 = arith.constant 0 : i32
    %c0_i32_0 = arith.constant 0 : i32
    %c0_i32_1 = arith.constant 0 : i32
    return %c0_i32, %c0_i32_0 : i32, i32
  }
  func.func @transform_5(%arg0: i32) -> (i32, i32) {
    %c0_i32 = arith.constant 0 : i32
    %c0_i32_0 = arith.constant 0 : i32
    return %c0_i32, %arg0 : i32, i32
  }
}

</mosaic_0001>

<llo_original>
// kernel: tpu_custom_call.1
$region0: #{tpu_custom_call.1}
  #allocation0 [shape = 'u32[]', space=smem, size = 0x4, offset = 0x4, fixed_abs, tag = 'smem constant byte address 0x4 - core index']
  #allocation1 [shape = 'u32[144,128]{1,0:T(1,128)}', space=vmem, size = 0x12000, scoped, tag = 'internal scratch']
  %s0 = inlined_call_operand.vmem [shape: f32[16,8], index: 0, kind: input, shape index: {}]
  %s1 = inlined_call_operand.vmem [shape: f32[50,16], index: 1, kind: input, shape index: {}]
  %s2 = inlined_call_operand.vmem [shape: f32[50,1], index: 2, kind: input, shape index: {}]
  %s3 = inlined_call_operand.vmem [shape: f32[8,50], index: 3, kind: input, shape index: {}]
  %s4 = inlined_call_operand.vmem [shape: f32[8,1], index: 4, kind: input, shape index: {}]
  %s5 = inlined_call_operand.hbm [shape: f32[8,8], index: 5, kind: output, shape index: {}]
  %s6 = sld [smem:[#allocation0]]
  $region30: #{tpu_custom_call.1} parent=0
    _
  %s8 = ssub.s32 1, %s6
  %s9 = scalar_select 0, %s8, %s6
  $region1: #{tpu_custom_call.1} parent=0
    #allocation2 [shape = 'u8[4096]{0}', space=vmem, size = 0x1000, scoped, tag = 'output window, operand 0, single buffered']
    #allocation3 [shape = 's32[1]{0}', space=sflag, size = 0x4, scoped, tag = 'scoped memory for tpu_custom_call.1']
    %10 = vsyncpa [#allocation3], 0
    // Predicated region
    $region2: #{tpu_custom_call.1} parent=1 // pred_check
      _
    $region3: #{tpu_custom_call.1} parent=1 // pred_check_branch
      %12 = sbr.rel (0) target = $region5
    $region4: #{tpu_custom_call.1} parent=1 // pred_region
      _
    $region5: #{tpu_custom_call.1} parent=1 // pred_fallthru
      _
    // Predicated region
    $region6: #{tpu_custom_call.1} parent=1 // pred_check
      _
    $region7: #{tpu_custom_call.1} parent=1 // pred_check_branch
      %14 = sbr.rel (0) target = $region9
    $region8: #{tpu_custom_call.1} parent=1 // pred_region
      _
    $region9: #{tpu_custom_call.1} parent=1 // pred_fallthru
      _
    // Predicated region
    $region10: #{tpu_custom_call.1} parent=1 // pred_check
      _
    $region11: #{tpu_custom_call.1} parent=1 // pred_check_branch
      %16 = sbr.rel (0) target = $region13
    $region12: #{tpu_custom_call.1} parent=1 // pred_region
      _
    $region13: #{tpu_custom_call.1} parent=1 // pred_fallthru
      _
    // Predicated region
    $region14: #{tpu_custom_call.1} parent=1 // pred_check
      _
    $region15: #{tpu_custom_call.1} parent=1 // pred_check_branch
      %18 = sbr.rel (0) target = $region17
    $region16: #{tpu_custom_call.1} parent=1 // pred_region
      _
    $region17: #{tpu_custom_call.1} parent=1 // pred_fallthru
      _
    // Predicated region
    $region18: #{tpu_custom_call.1} parent=1 // pred_check
      _
    $region19: #{tpu_custom_call.1} parent=1 // pred_check_branch
      %20 = sbr.rel (0) target = $region21
    $region20: #{tpu_custom_call.1} parent=1 // pred_region
      _
    $region21: #{tpu_custom_call.1} parent=1 // pred_fallthru
      _
    %v21 = vld [vmem:[%s1] sm:$0xff]
    %v22 = vld [vmem:[%s1 + $0x8] sm:$0xff]
    %v23 = vld [vmem:[%s1 + $0x10] sm:$0xff]
    %v24 = vld [vmem:[%s1 + $0x18] sm:$0xff]
    %v25 = vld [vmem:[%s1 + $0x20] sm:$0xff]
    %v26 = vld [vmem:[%s1 + $0x28] sm:$0xff]
    %v27 = vld [vmem:[%s1 + $0x30] sm:$0x3]
    %v28 = vld [vmem:[%s0] sm:$0xff]
    %v29 = vld [vmem:[%s0 + $0x8] sm:$0xff]
    %v30 = vld [vmem:[%s2] sm:$0xff]
    %v31 = vld [vmem:[%s2 + $0x8] sm:$0xff]
    %v32 = vld [vmem:[%s2 + $0x10] sm:$0xff]
    %v33 = vld [vmem:[%s2 + $0x18] sm:$0xff]
    %v34 = vld [vmem:[%s2 + $0x20] sm:$0xff]
    %v35 = vld [vmem:[%s2 + $0x28] sm:$0xff]
    %v36 = vld [vmem:[%s2 + $0x30] sm:$0x3]
    %38 = vset.pattern.permute.xlu0 0
    %39 = vperm.xlu0 %38, %v30
    %v40 = vpop.permute.xlu0 %39
    %43 = vset.pattern.permute.xlu0 0
    %44 = vperm.xlu0 %43, %v31
    %v45 = vpop.permute.xlu0 %44
    %48 = vset.pattern.permute.xlu0 0
    %49 = vperm.xlu0 %48, %v32
    %v50 = vpop.permute.xlu0 %49
    %53 = vset.pattern.permute.xlu0 0
    %54 = vperm.xlu0 %53, %v33
    %v55 = vpop.permute.xlu0 %54
    %58 = vset.pattern.permute.xlu0 0
    %59 = vperm.xlu0 %58, %v34
    %v60 = vpop.permute.xlu0 %59
    %63 = vset.pattern.permute.xlu0 0
    %64 = vperm.xlu0 %63, %v35
    %v65 = vpop.permute.xlu0 %64
    %68 = vset.pattern.permute.xlu0 0
    %69 = vperm.xlu0 %68, %v36
    %v70 = vpop.permute.xlu0 %69
    %vm72 = vcmask 130048
    %v74 = vsel %vm72, %v21, 0
    %v77 = vsel %vm72, %v22, 0
    %v80 = vsel %vm72, %v23, 0
    %v83 = vsel %vm72, %v24, 0
    %v86 = vsel %vm72, %v25, 0
    %v89 = vsel %vm72, %v26, 0
    %v92 = vsel %vm72, %v27, 0
    %94 = vmatprep.subr.mxu0 0.0
    %95 = vmatpush1.msra.mxu0 %v28
    %96 = vmatprep.subr.mxu0 0.0
    %97 = vmatpush1.msra.mxu0 %v29
    %98 = vmatprep.subr.mxu0 0.0
    %99 = vmatpush1.msra.mxu0 0.0
    %100 = vmatprep.subr.mxu0 0.0
    %101 = vmatpush1.msra.mxu0 0.0
    %102 = vmatprep.subr.mxu0 0.0
    %103 = vmatpush1.msra.mxu0 0.0
    %104 = vmatprep.subr.mxu0 0.0
    %105 = vmatpush1.msra.mxu0 0.0
    %106 = vmatprep.subr.mxu0 0.0
    %107 = vmatpush1.msra.mxu0 0.0
    %108 = vmatprep.subr.mxu0 0.0
    %109 = vmatpush1.msra.mxu0 0.0
    %110 = vmatprep.subr.mxu0 0.0
    %111 = vmatpush1.msra.mxu0 0.0
    %112 = vmatprep.subr.mxu0 0.0
    %113 = vmatpush1.msra.mxu0 0.0
    %114 = vmatprep.subr.mxu0 0.0
    %115 = vmatpush1.msra.mxu0 0.0
    %116 = vmatprep.subr.mxu0 0.0
    %117 = vmatpush1.msra.mxu0 0.0
    %118 = vmatprep.subr.mxu0 0.0
    %119 = vmatpush1.msra.mxu0 0.0
    %120 = vmatprep.subr.mxu0 0.0
    %121 = vmatpush1.msra.mxu0 0.0
    %122 = vmatprep.subr.mxu0 0.0
    %123 = vmatpush1.msra.mxu0 0.0
    %124 = vmatprep.subr.mxu0 0.0
    %125 = vmatpush1.msra.mxu0 0.0
    %126 = vmatprep.subr.mxu0 0.0
    %127 = vmatpush1.msra.mxu0 0.0
    %128 = vmatprep.subr.mxu0 0.0
    %129 = vmatpush1.msra.mxu0 0.0
    %130 = vmatprep.subr.mxu0 0.0
    %131 = vmatpush1.msra.mxu0 0.0
    %132 = vmatprep.subr.mxu0 0.0
    %133 = vmatpush1.msra.mxu0 0.0
    %134 = vmatprep.subr.mxu0 0.0
    %135 = vmatpush1.msra.mxu0 0.0
    %136 = vmatprep.subr.mxu0 0.0
    %137 = vmatpush1.msra.mxu0 0.0
    %138 = vmatprep.subr.mxu0 0.0
    %139 = vmatpush1.msra.mxu0 0.0
    %140 = vmatprep.subr.mxu0 0.0
    %141 = vmatpush1.msra.mxu0 0.0
    %142 = vmatprep.subr.mxu0 0.0
    %143 = vmatpush1.msra.mxu0 0.0
    %144 = vmatprep.subr.mxu0 0.0
    %145 = vmatpush1.msra.mxu0 0.0
    %146 = vmatprep.subr.mxu0 0.0
    %147 = vmatpush1.msra.mxu0 0.0
    %148 = vmatprep.subr.mxu0 0.0
    %149 = vmatpush1.msra.mxu0 0.0
    %150 = vmatprep.subr.mxu0 0.0
    %151 = vmatpush1.msra.mxu0 0.0
    %152 = vmatprep.subr.mxu0 0.0
    %153 = vmatpush1.msra.mxu0 0.0
    %154 = vmatprep.subr.mxu0 0.0
    %155 = vmatpush1.msra.mxu0 0.0
    %156 = vmatprep.subr.mxu0 0.0
    %157 = vmatpush1.msra.mxu0 0.0
    %158 = vmatprep.mubr.f32.mxu0 0.0
    %159 = vmatmul.mubr.f32.gmra.mrb[0].mxu0 %v74
    %v160 = vpop.f32.mrb[0].mxu0
    %v161 = vadd.f32 %v40, %v160
    %v162 = vpop.f32.mrb[0].mxu0
    %163 = vmatprep.mubr.f32.mxu0 0.0
    %164 = vmatmul.mubr.f32.gmra.mrb[0].mxu0 %v77
    %v165 = vpop.f32.mrb[0].mxu0
    %v166 = vadd.f32 %v45, %v165
    %v167 = vpop.f32.mrb[0].mxu0
    %168 = vmatprep.mubr.f32.mxu0 0.0
    %169 = vmatmul.mubr.f32.gmra.mrb[0].mxu0 %v80
    %v170 = vpop.f32.mrb[0].mxu0
    %v171 = vadd.f32 %v50, %v170
    %v172 = vpop.f32.mrb[0].mxu0
    %173 = vmatprep.mubr.f32.mxu0 0.0
    %174 = vmatmul.mubr.f32.gmra.mrb[0].mxu0 %v83
    %v175 = vpop.f32.mrb[0].mxu0
    %v176 = vadd.f32 %v55, %v175
    %v177 = vpop.f32.mrb[0].mxu0
    %178 = vmatprep.mubr.f32.mxu0 0.0
    %179 = vmatmul.mubr.f32.gmra.mrb[0].mxu0 %v86
    %v180 = vpop.f32.mrb[0].mxu0
    %v181 = vadd.f32 %v60, %v180
    %v182 = vpop.f32.mrb[0].mxu0
    %183 = vmatprep.mubr.f32.mxu0 0.0
    %184 = vmatmul.mubr.f32.gmra.mrb[0].mxu0 %v89
    %v185 = vpop.f32.mrb[0].mxu0
    %v186 = vadd.f32 %v65, %v185
    %v187 = vpop.f32.mrb[0].mxu0
    %188 = vmatprep.mubr.f32.mxu0 0.0
    %189 = vmatmul.mubr.f32.gmra.mrb[0].mxu0 %v92
    %v190 = vpop.f32.mrb[0].mxu0
    %v191 = vadd.f32 %v70, %v190
    %v192 = vpop.f32.mrb[0].mxu0
    %193 = vdwg.mxu0
    %v194 = vmax.f32 %v161, 0.0
    %v195 = vmax.f32 %v166, 0.0
    %v196 = vmax.f32 %v171, 0.0
    %v197 = vmax.f32 %v176, 0.0
    %v198 = vmax.f32 %v181, 0.0
    %v199 = vmax.f32 %v186, 0.0
    %v200 = vmax.f32 %v191, 0.0
    %v201 = vld [vmem:[%s3] sm:$0xff]
    %v202 = vld [vmem:[%s4] sm:$0xff]
    %204 = vset.pattern.permute.xlu0 0
    %205 = vperm.xlu0 %204, %v202
    %v206 = vpop.permute.xlu0 %205
    %vm208 = vcmask 408576
    %v210 = vsel %vm208, %v201, 0
    %vm212 = vcmask 1041408
    %v214 = vsel %vm212, %v200, 0
    %216 = vmatprep.subr.mxu0 0.0
    %217 = vmatpush1.msra.mxu0 %v194
    %218 = vmatprep.subr.mxu0 0.0
    %219 = vmatpush1.msra.mxu0 %v195
    %220 = vmatprep.subr.mxu0 0.0
    %221 = vmatpush1.msra.mxu0 %v196
    %222 = vmatprep.subr.mxu0 0.0
    %223 = vmatpush1.msra.mxu0 %v197
    %224 = vmatprep.subr.mxu0 0.0
    %225 = vmatpush1.msra.mxu0 %v198
    %226 = vmatprep.subr.mxu0 0.0
    %227 = vmatpush1.msra.mxu0 %v199
    %228 = vmatprep.subr.mxu0 0.0
    %229 = vmatpush1.msra.mxu0 %v214
    %230 = vmatprep.subr.mxu0 0.0
    %231 = vmatpush1.msra.mxu0 0.0
    %232 = vmatprep.subr.mxu0 0.0
    %233 = vmatpush1.msra.mxu0 0.0
    %234 = vmatprep.subr.mxu0 0.0
    %235 = vmatpush1.msra.mxu0 0.0
    %236 = vmatprep.subr.mxu0 0.0
    %237 = vmatpush1.msra.mxu0 0.0
    %238 = vmatprep.subr.mxu0 0.0
    %239 = vmatpush1.msra.mxu0 0.0
    %240 = vmatprep.subr.mxu0 0.0
    %241 = vmatpush1.msra.mxu0 0.0
    %242 = vmatprep.subr.mxu0 0.0
    %243 = vmatpush1.msra.mxu0 0.0
    %244 = vmatprep.subr.mxu0 0.0
    %245 = vmatpush1.msra.mxu0 0.0
    %246 = vmatprep.subr.mxu0 0.0
    %247 = vmatpush1.msra.mxu0 0.0
    %248 = vmatprep.subr.mxu0 0.0
    %249 = vmatpush1.msra.mxu0 0.0
    %250 = vmatprep.subr.mxu0 0.0
    %251 = vmatpush1.msra.mxu0 0.0
    %252 = vmatprep.subr.mxu0 0.0
    %253 = vmatpush1.msra.mxu0 0.0
    %254 = vmatprep.subr.mxu0 0.0
    %255 = vmatpush1.msra.mxu0 0.0
    %256 = vmatprep.subr.mxu0 0.0
    %257 = vmatpush1.msra.mxu0 0.0
    %258 = vmatprep.subr.mxu0 0.0
    %259 = vmatpush1.msra.mxu0 0.0
    %260 = vmatprep.subr.mxu0 0.0
    %261 = vmatpush1.msra.mxu0 0.0
    %262 = vmatprep.subr.mxu0 0.0
    %263 = vmatpush1.msra.mxu0 0.0
    %264 = vmatprep.subr.mxu0 0.0
    %265 = vmatpush1.msra.mxu0 0.0
    %266 = vmatprep.subr.mxu0 0.0
    %267 = vmatpush1.msra.mxu0 0.0
    %268 = vmatprep.subr.mxu0 0.0
    %269 = vmatpush1.msra.mxu0 0.0
    %270 = vmatprep.subr.mxu0 0.0
    %271 = vmatpush1.msra.mxu0 0.0
    %272 = vmatprep.subr.mxu0 0.0
    %273 = vmatpush1.msra.mxu0 0.0
    %274 = vmatprep.subr.mxu0 0.0
    %275 = vmatpush1.msra.mxu0 0.0
    %276 = vmatprep.subr.mxu0 0.0
    %277 = vmatpush1.msra.mxu0 0.0
    %278 = vmatprep.subr.mxu0 0.0
    %279 = vmatpush1.msra.mxu0 0.0
    %280 = vmatprep.mubr.f32.mxu0 0.0
    %281 = vmatmul.mubr.f32.gmra.mrb[0].mxu0 %v210
    %v282 = vpop.f32.mrb[0].mxu0
    %v283 = vadd.f32 %v206, %v282
    %v284 = vpop.f32.mrb[0].mxu0
    %285 = vdwg.mxu0
    %v286 = vmax.f32 %v283, 0.0
    %vm287 = vcmp.ne.f32.partialorder %v283, %v283
    %v288 = vadd.f32 %v283, 0.0
    %v289 = vand.u32 2147483647, %v283
    %v290 = vsub.f32 0.0, %v289
    %v291 = vmul.f32 %v290, 1.442695
    %v292 = vpow.pop %v291
    %v293 = vadd.f32 %v292, 1.0
    %v294 = vlog2.pop %v293
    %v295 = vmul.f32 %v294, 0.6931472
    %v296 = vmul.f32 -0.5, %v292
    %v297 = vadd.f32 %v296, 1.0
    %v298 = vmul.f32 %v297, %v292
    %v299 = vand.u32 2147483647, %v292
    %vm300 = vcmp.lt.f32.partialorder %v299, 0.0004427343
    %v301 = vsel %vm300, %v298, %v295
    %v302 = vadd.f32 %v286, %v301
    %v303 = vsel %vm287, %v288, %v302
    %v304 = vadd.f32 %v303, 0.001
    %v305 = vxor.u32 %v283, 2147483648
    %v306 = vmul.f32 %v305, 1.442695
    %v307 = vpow.pop %v306
    %v308 = vadd.f32 %v307, 1.0
    %v309 = vrcp.pop %v308
    %v310 = vmul.f32 1.0, %v309
    %v311 = vlaneseq
    %v312 = vshrl.u32 %v311, 7
    %vm313 = vcmp.eq.s32.totalorder %v312, 1
    %vm314 = vcmp.eq.s32.totalorder %v312, 6
    %vm315 = vmor %vm313, %vm314
    %v316 = vsel %vm315, %v304, %v283
    %vm317 = vcmp.eq.s32.totalorder %v312, 7
    %v318 = vmin.f32 %v304, 10000.0
    %v319 = vsel %vm317, %v318, %v316
    %vm320 = vcmp.eq.s32.totalorder %v312, 2
    %v321 = vsel %vm320, %v310, %v319
    %vm322 = vcmp.ge.s32.totalorder %v312, 3
    %vm323 = vcmp.lt.s32.totalorder %v312, 6
    %vm324 = vmand %vm322, %vm323
    %v325 = vsel %vm324, %v283, -inf
    %vm326 = vcmask 64512
    %v327 = vsel %vm326, %v325, -inf
    %v328 = vrot.slane %v327, 4
    %v329 = vmax.f32 %v327, %v328
    %v330 = vrot.slane %v329, 2
    %v331 = vmax.f32 %v329, %v330
    %v332 = vrot.slane %v331, 1
    %v333 = vmax.f32 %v331, %v332
    %v334 = vsub.f32 %v283, %v333
    %v335 = vmul.f32 %v334, 1.442695
    %v336 = vpow.pop %v335
    %v337 = vsel %vm324, %v336, 0.0
    %v338 = vsel %vm326, %v337, 0.0
    %v339 = vrot.slane %v338, 4
    %v340 = vadd.f32 %v338, %v339
    %v341 = vrot.slane %v340, 2
    %v342 = vadd.f32 %v340, %v341
    %v343 = vrot.slane %v342, 1
    %v344 = vadd.f32 %v342, %v343
    %v345 = vrcp.pop %v344
    %v346 = vmul.f32 %v337, %v345
    %v347 = vsel %vm324, %v346, %v321
    %348 = vst.msk [vmem:[#allocation2] sm:$0xff] %vm326, %v347
    // Predicated region
    $region22: #{tpu_custom_call.1} parent=1 // pred_check
      _
    $region23: #{tpu_custom_call.1} parent=1 // pred_check_branch
      %350 = sbr.rel (0) target = $region25
    $region24: #{tpu_custom_call.1} parent=1 // pred_region
      %s352 = ssub.s32 128, 128
      %353 = vsyncadd [#allocation3], %s352
      %s355 = sshll.u32 [#allocation2], 4
      %s356 = int_to_ptr.vmem [resolvable:$true] %s355
      %358 = dma.vmem_to_hbm [thread:$0]  %s356, 128, %s5, [#allocation3]
    $region25: #{tpu_custom_call.1} parent=1 // pred_fallthru
      _
    // Predicated region
    $region26: #{tpu_custom_call.1} parent=1 // pred_check
      _
    $region27: #{tpu_custom_call.1} parent=1 // pred_check_branch
      %360 = sbr.rel (0) target = $region29
    $region28: #{tpu_custom_call.1} parent=1 // pred_region
      %361 = dma.done [#allocation3], 128
    $region29: #{tpu_custom_call.1} parent=1 // pred_fallthru
      _
    %362 = vsyncpa [#allocation3], 1

</llo_original>
